<compile_context>
chip_gen: v6e
topology: v6e:2x2x1
jax: 0.10.0
libtpu: 0.0.40
codegen_flags: <defaults>
</compile_context>

<pallas_src>
import functools

import jax
import jax.numpy as jnp
from jax.experimental import pallas as pl
from jax.experimental.pallas import tpu as pltpu

LANE = 128
SUBLANE = 8


# ---------------------------------------------------------------------------
# Fused MLP kernel: x -> [Linear + clamp(min=0)]*  -> Linear (padded logits)
# Everything (params + activations) is VMEM-resident; single invocation, no grid.
# ---------------------------------------------------------------------------
def _fused_mlp_kernel(*refs, num_layers, apply_sigmoid):
    # refs = (x_ref, w0, b0, w1, b1, ..., w_{L-1}, b_{L-1}, o_ref)
    x_ref = refs[0]
    o_ref = refs[-1]
    params = refs[1:-1]

    h = x_ref[...]                                            # (B_pad, K0) f32
    for i in range(num_layers):                               # static unroll at trace time
        w = params[2 * i][...]                                # (K_i, N_i) bf16
        b = params[2 * i + 1][...]                            # (1,  N_i) f32
        # bf16 x bf16 MXU matmul with f32 accumulation; bias/ReLU in f32 on the VPU.
        h = jnp.dot(h.astype(w.dtype), w,
                    preferred_element_type=jnp.float32) + b
        if i < num_layers - 1:
            h = jnp.maximum(h, 0.0)                           # == torch .clamp(min=0)
    if apply_sigmoid:                                         # 'Sigmoid*' layer types only
        h = jax.nn.sigmoid(h)
    o_ref[...] = h                                            # f32, lane-dense (B_pad, 128)


# ---------------------------------------------------------------------------
# Wrapper: single pallas_call, untiled VMEM refs (no grid / no pipelining)
# ---------------------------------------------------------------------------
def linear_base_model_forward(x, params, *, output_units, apply_sigmoid=False):
    flat = []
    for w, b in params["layers"]:
        flat.extend([w, b])
    flat.extend([params["last_w"], params["last_b"]])
    num_layers = len(flat) // 2

    batch = x.shape[0]
    n_pad = params["last_w"].shape[1]                         # lane-padded logits dim (128)

    # Pad batch to a sublane multiple so the output store is a full unmasked vst.
    b_pad = ((batch + SUBLANE - 1) // SUBLANE) * SUBLANE
    if b_pad != batch:
        x = jnp.pad(x, ((0, b_pad - batch), (0, 0)))

    arrays = [x] + flat
    vmem = pltpu.MemorySpace.VMEM
    kernel = functools.partial(
        _fused_mlp_kernel, num_layers=num_layers, apply_sigmoid=apply_sigmoid
    )
    out_padded = pl.pallas_call(
        kernel,
        out_shape=jax.ShapeDtypeStruct((b_pad, n_pad), jnp.float32),
        in_specs=[pl.BlockSpec(memory_space=vmem) for _ in arrays],
        out_specs=pl.BlockSpec(memory_space=vmem),
    )(*arrays)
    return out_padded[:batch, :output_units]                  # drop padded rows/columns


# ---------------------------------------------------------------------------
# Deterministic parameter init (PyTorch-Linear-style uniform bounds)
# Weights stored bf16 (MXU inputs), biases f32, last layer zero-padded to 128 lanes.
# ---------------------------------------------------------------------------
def init_params(key, hidden_units=(256, 128, 128), output_units=10):
    dims = tuple(hidden_units)
    n_hidden = len(dims) - 1                                  # Linears in self.layers
    keys = jax.random.split(key, 2 * n_hidden + 2)

    params = {"layers": []}
    for i in range(n_hidden):
        bound = float(dims[i]) ** -0.5
        w = jax.random.uniform(keys[2 * i], (dims[i], dims[i + 1]),
                               jnp.float32, -bound, bound).astype(jnp.bfloat16)
        b = jax.random.uniform(keys[2 * i + 1], (1, dims[i + 1]),
                               jnp.float32, -bound, bound)
        params["layers"].append((w, b))

    # last_layer: Linear(hidden_units[-1], output_units), zero-padded to 128 lanes
    bound = float(dims[-1]) ** -0.5
    n_pad = ((output_units + LANE - 1) // LANE) * LANE
    w_last = jax.random.uniform(keys[-2], (dims[-1], output_units),
                                jnp.float32, -bound, bound)
    b_last = jax.random.uniform(keys[-1], (1, output_units),
                                jnp.float32, -bound, bound)
    params["last_w"] = (jnp.zeros((dims[-1], n_pad), jnp.float32)
                        .at[:, :output_units].set(w_last).astype(jnp.bfloat16))
    params["last_b"] = jnp.zeros((1, n_pad), jnp.float32).at[:, :output_units].set(b_last)
    return params


# ---------------------------------------------------------------------------
if __name__ == "__main__":
    key = jax.random.PRNGKey(0)
    kx, kp = jax.random.split(key)

    batch = 2
    hidden_units = (256, 128, 128)        # conf.hidden_units; [0] is the flattened input dim
    output_units = 10                     # conf.output_units; conf.layer_type == 'FC'

    x = jax.random.normal(kx, (batch, hidden_units[0]), jnp.float32)
    params = init_params(kp, hidden_units=hidden_units, output_units=output_units)

    fwd = jax.jit(functools.partial(linear_base_model_forward,
                                    output_units=output_units,
                                    apply_sigmoid=False))
    out = fwd(x, params)
    out = jax.block_until_ready(out)

    assert out.shape == (batch, output_units), out.shape
    assert bool(jnp.all(jnp.isfinite(out)))
    print("KERNEL_OK")
</pallas_src>

<mosaic_0001>
module attributes {stable_mosaic.version = 11 : i64} {
  func.func @_fused_mlp_kernel(%arg0: memref<8x256xf32, #tpu.memory_space<vmem>>, %arg1: memref<256x128xbf16, #tpu.memory_space<vmem>>, %arg2: memref<1x128xf32, #tpu.memory_space<vmem>>, %arg3: memref<128x128xbf16, #tpu.memory_space<vmem>>, %arg4: memref<1x128xf32, #tpu.memory_space<vmem>>, %arg5: memref<128x128xbf16, #tpu.memory_space<vmem>>, %arg6: memref<1x128xf32, #tpu.memory_space<vmem>>, %arg7: memref<8x128xf32, #tpu.memory_space<vmem>>) attributes {dimension_semantics = [], scalar_prefetch = 0 : i64, scratch_operands = 0 : i64, tpu.core_type = #tpu.core_type<tc>} {
    %c0 = arith.constant 0 : index
    %c0_0 = arith.constant 0 : index
    %0 = vector.load %arg0[%c0, %c0_0] : memref<8x256xf32, #tpu.memory_space<vmem>>, vector<8x256xf32>
    %c0_1 = arith.constant 0 : index
    %c0_2 = arith.constant 0 : index
    %1 = vector.load %arg1[%c0_1, %c0_2] : memref<256x128xbf16, #tpu.memory_space<vmem>>, vector<256x128xbf16>
    %c0_3 = arith.constant 0 : index
    %c0_4 = arith.constant 0 : index
    %2 = vector.load %arg2[%c0_3, %c0_4] : memref<1x128xf32, #tpu.memory_space<vmem>>, vector<1x128xf32>
    %3 = arith.truncf %0 : vector<8x256xf32> to vector<8x256xbf16>
    %cst = arith.constant dense<0.000000e+00> : vector<8x128xf32>
    %4 = tpu.matmul %3, %1, %cst {dimension_numbers = #tpu.dot_dimension_numbers<[1], [0], [0], [1], [0, 0, 1, 1], [], []>} : vector<8x256xbf16>, vector<256x128xbf16>, vector<8x128xf32> -> vector<8x128xf32>
    %5 = vector.broadcast %2 : vector<1x128xf32> to vector<8x128xf32>
    %6 = arith.addf %4, %5 : vector<8x128xf32>
    %cst_5 = arith.constant 0.000000e+00 : f32
    %7 = vector.broadcast %cst_5 : f32 to vector<8x128xf32>
    %8 = arith.maximumf %6, %7 : vector<8x128xf32>
    %c0_6 = arith.constant 0 : index
    %c0_7 = arith.constant 0 : index
    %9 = vector.load %arg3[%c0_6, %c0_7] : memref<128x128xbf16, #tpu.memory_space<vmem>>, vector<128x128xbf16>
    %c0_8 = arith.constant 0 : index
    %c0_9 = arith.constant 0 : index
    %10 = vector.load %arg4[%c0_8, %c0_9] : memref<1x128xf32, #tpu.memory_space<vmem>>, vector<1x128xf32>
    %11 = arith.truncf %8 : vector<8x128xf32> to vector<8x128xbf16>
    %cst_10 = arith.constant dense<0.000000e+00> : vector<8x128xf32>
    %12 = tpu.matmul %11, %9, %cst_10 {dimension_numbers = #tpu.dot_dimension_numbers<[1], [0], [0], [1], [0, 0, 1, 1], [], []>} : vector<8x128xbf16>, vector<128x128xbf16>, vector<8x128xf32> -> vector<8x128xf32>
    %13 = vector.broadcast %10 : vector<1x128xf32> to vector<8x128xf32>
    %14 = arith.addf %12, %13 : vector<8x128xf32>
    %cst_11 = arith.constant 0.000000e+00 : f32
    %15 = vector.broadcast %cst_11 : f32 to vector<8x128xf32>
    %16 = arith.maximumf %14, %15 : vector<8x128xf32>
    %c0_12 = arith.constant 0 : index
    %c0_13 = arith.constant 0 : index
    %17 = vector.load %arg5[%c0_12, %c0_13] : memref<128x128xbf16, #tpu.memory_space<vmem>>, vector<128x128xbf16>
    %c0_14 = arith.constant 0 : index
    %c0_15 = arith.constant 0 : index
    %18 = vector.load %arg6[%c0_14, %c0_15] : memref<1x128xf32, #tpu.memory_space<vmem>>, vector<1x128xf32>
    %19 = arith.truncf %16 : vector<8x128xf32> to vector<8x128xbf16>
    %cst_16 = arith.constant dense<0.000000e+00> : vector<8x128xf32>
    %20 = tpu.matmul %19, %17, %cst_16 {dimension_numbers = #tpu.dot_dimension_numbers<[1], [0], [0], [1], [0, 0, 1, 1], [], []>} : vector<8x128xbf16>, vector<128x128xbf16>, vector<8x128xf32> -> vector<8x128xf32>
    %21 = vector.broadcast %18 : vector<1x128xf32> to vector<8x128xf32>
    %22 = arith.addf %20, %21 : vector<8x128xf32>
    %c0_17 = arith.constant 0 : index
    %c0_18 = arith.constant 0 : index
    %23 = vector.load %arg7[%c0_17, %c0_18] : memref<8x128xf32, #tpu.memory_space<vmem>>, vector<8x128xf32>
    tpu.vector_store %arg7[%c0_17, %c0_18], %22 {strides = array<i32>} : memref<8x128xf32, #tpu.memory_space<vmem>>, vector<8x128xf32>,
    return
  }
}

</mosaic_0001>

<llo_original>
// kernel: linear_base_model_forward.1
$region0: #{linear_base_model_forward.1}
  #allocation0 [shape = 'u32[]', space=smem, size = 0x4, offset = 0x4, fixed_abs, tag = 'smem constant byte address 0x4 - core index']
  #allocation1 [shape = 'u32[144,128]{1,0:T(1,128)}', space=vmem, size = 0x12000, scoped, tag = 'internal scratch']
  %s0 = inlined_call_operand.vmem [shape: f32[8,256], index: 0, kind: input, shape index: {}]
  %s1 = inlined_call_operand.hbm [shape: bf16[256,128], index: 1, kind: input, shape index: {}]
  %s2 = inlined_call_operand.vmem [shape: f32[1,128], index: 2, kind: input, shape index: {}]
  %s3 = inlined_call_operand.hbm [shape: bf16[128,128], index: 3, kind: input, shape index: {}]
  %s4 = inlined_call_operand.vmem [shape: f32[1,128], index: 4, kind: input, shape index: {}]
  %s5 = inlined_call_operand.hbm [shape: bf16[128,128], index: 5, kind: input, shape index: {}]
  %s6 = inlined_call_operand.vmem [shape: f32[1,128], index: 6, kind: input, shape index: {}]
  %s7 = inlined_call_operand.vmem [shape: f32[8,128], index: 7, kind: output, shape index: {}]
  %s8 = sld [smem:[#allocation0]]
  $region50: #{linear_base_model_forward.1} parent=0
    _
  %s10 = ssub.s32 1, %s8
  %s11 = scalar_select 0, %s10, %s8
  $region1: #{linear_base_model_forward.1} parent=0
    #allocation2 [shape = 'u8[65536]{0}', space=vmem, size = 0x10000, scoped, tag = 'input window, operand 1, single buffered']
    #allocation3 [shape = 's32[1]{0}', space=sflag, size = 0x4, scoped, tag = 'scoped memory for linear_base_model_forward.1']
    #allocation4 [shape = 'u8[32768]{0}', space=vmem, size = 0x8000, scoped, tag = 'input window, operand 3, single buffered']
    #allocation5 [shape = 's32[1]{0}', space=sflag, size = 0x4, scoped, tag = 'scoped memory for linear_base_model_forward.1']
    #allocation6 [shape = 'u8[32768]{0}', space=vmem, size = 0x8000, scoped, tag = 'input window, operand 5, single buffered']
    %12 = vsyncpa [#allocation3], 0
    %13 = vsyncpa [#allocation5], 0
    // Predicated region
    $region2: #{linear_base_model_forward.1} parent=1 // pred_check
      _
    $region3: #{linear_base_model_forward.1} parent=1 // pred_check_branch
      %15 = sbr.rel (0) target = $region5
    $region4: #{linear_base_model_forward.1} parent=1 // pred_region
      _
    $region5: #{linear_base_model_forward.1} parent=1 // pred_fallthru
      _
    // Predicated region
    $region6: #{linear_base_model_forward.1} parent=1 // pred_check
      _
    $region7: #{linear_base_model_forward.1} parent=1 // pred_check_branch
      %17 = sbr.rel (0) target = $region9
    $region8: #{linear_base_model_forward.1} parent=1 // pred_region
      %s19 = ssub.s32 2048, 2048
      %20 = vsyncadd [#allocation3], %s19
      %s21 = sshll.u32 [#allocation2], 4
      %s22 = int_to_ptr.vmem [resolvable:$true] %s21
      %27 = dma.hbm_to_vmem [thread:$0]  %s1, 2048, %s22, [#allocation3], 64, 64, 4
    $region9: #{linear_base_model_forward.1} parent=1 // pred_fallthru
      _
    // Predicated region
    $region10: #{linear_base_model_forward.1} parent=1 // pred_check
      _
    $region11: #{linear_base_model_forward.1} parent=1 // pred_check_branch
      %29 = sbr.rel (0) target = $region13
    $region12: #{linear_base_model_forward.1} parent=1 // pred_region
      _
    $region13: #{linear_base_model_forward.1} parent=1 // pred_fallthru
      _
    // Predicated region
    $region14: #{linear_base_model_forward.1} parent=1 // pred_check
      _
    $region15: #{linear_base_model_forward.1} parent=1 // pred_check_branch
      %31 = sbr.rel (0) target = $region17
    $region16: #{linear_base_model_forward.1} parent=1 // pred_region
      %s33 = ssub.s32 1024, 1024
      %34 = vsyncadd [#allocation5], %s33
      %s35 = sshll.u32 [#allocation4], 4
      %s36 = int_to_ptr.vmem [resolvable:$true] %s35
      %41 = dma.hbm_to_vmem [thread:$0]  %s3, 1024, %s36, [#allocation5], 64, 64, 4
    $region17: #{linear_base_model_forward.1} parent=1 // pred_fallthru
      _
    // Predicated region
    $region18: #{linear_base_model_forward.1} parent=1 // pred_check
      _
    $region19: #{linear_base_model_forward.1} parent=1 // pred_check_branch
      %43 = sbr.rel (0) target = $region21
    $region20: #{linear_base_model_forward.1} parent=1 // pred_region
      _
    $region21: #{linear_base_model_forward.1} parent=1 // pred_fallthru
      _
    // Predicated region
    $region22: #{linear_base_model_forward.1} parent=1 // pred_check
      _
    $region23: #{linear_base_model_forward.1} parent=1 // pred_check_branch
      %45 = sbr.rel (0) target = $region25
    $region24: #{linear_base_model_forward.1} parent=1 // pred_region
      %s47 = ssub.s32 1024, 1024
      %48 = vsyncadd [#allocation5], %s47
      %s49 = sshll.u32 [#allocation6], 4
      %s50 = int_to_ptr.vmem [resolvable:$true] %s49
      %55 = dma.hbm_to_vmem [thread:$0]  %s5, 1024, %s50, [#allocation5], 64, 64, 4
    $region25: #{linear_base_model_forward.1} parent=1 // pred_fallthru
      _
    // Predicated region
    $region26: #{linear_base_model_forward.1} parent=1 // pred_check
      _
    $region27: #{linear_base_model_forward.1} parent=1 // pred_check_branch
      %57 = sbr.rel (0) target = $region29
    $region28: #{linear_base_model_forward.1} parent=1 // pred_region
      _
    $region29: #{linear_base_model_forward.1} parent=1 // pred_fallthru
      _
    // Predicated region
    $region30: #{linear_base_model_forward.1} parent=1 // pred_check
      _
    $region31: #{linear_base_model_forward.1} parent=1 // pred_check_branch
      %59 = sbr.rel (0) target = $region33
    $region32: #{linear_base_model_forward.1} parent=1 // pred_region
      %60 = dma.done [#allocation3], 2048
    $region33: #{linear_base_model_forward.1} parent=1 // pred_fallthru
      _
    // Predicated region
    $region34: #{linear_base_model_forward.1} parent=1 // pred_check
      _
    $region35: #{linear_base_model_forward.1} parent=1 // pred_check_branch
      %62 = sbr.rel (0) target = $region37
    $region36: #{linear_base_model_forward.1} parent=1 // pred_region
      %63 = dma.done [#allocation5], 1024
    $region37: #{linear_base_model_forward.1} parent=1 // pred_fallthru
      _
    // Predicated region
    $region38: #{linear_base_model_forward.1} parent=1 // pred_check
      _
    $region39: #{linear_base_model_forward.1} parent=1 // pred_check_branch
      %65 = sbr.rel (0) target = $region41
    $region40: #{linear_base_model_forward.1} parent=1 // pred_region
      %66 = dma.done [#allocation5], 1024
    $region41: #{linear_base_model_forward.1} parent=1 // pred_fallthru
      _
    %v68 = vld [vmem:[%s0] sm:$0xff]
    %v69 = vld [vmem:[%s0 + $0x8] sm:$0xff]
    %v70 = vld [vmem:[#allocation2] sm:$0xf]
    %v71 = vld [vmem:[#allocation2 + $0x4] sm:$0xf]
    %v72 = vld [vmem:[#allocation2 + $0x8] sm:$0xf]
    %v73 = vld [vmem:[#allocation2 + $0xc] sm:$0xf]
    %v74 = vld [vmem:[#allocation2 + $0x10] sm:$0xf]
    %v75 = vld [vmem:[#allocation2 + $0x14] sm:$0xf]
    %v76 = vld [vmem:[#allocation2 + $0x18] sm:$0xf]
    %v77 = vld [vmem:[#allocation2 + $0x1c] sm:$0xf]
    %v78 = vld [vmem:[#allocation2 + $0x20] sm:$0xf]
    %v79 = vld [vmem:[#allocation2 + $0x24] sm:$0xf]
    %v80 = vld [vmem:[#allocation2 + $0x28] sm:$0xf]
    %v81 = vld [vmem:[#allocation2 + $0x2c] sm:$0xf]
    %v82 = vld [vmem:[#allocation2 + $0x30] sm:$0xf]
    %v83 = vld [vmem:[#allocation2 + $0x34] sm:$0xf]
    %v84 = vld [vmem:[#allocation2 + $0x38] sm:$0xf]
    %v85 = vld [vmem:[#allocation2 + $0x3c] sm:$0xf]
    %v86 = vld [vmem:[#allocation2 + $0x40] sm:$0xf]
    %v87 = vld [vmem:[#allocation2 + $0x44] sm:$0xf]
    %v88 = vld [vmem:[#allocation2 + $0x48] sm:$0xf]
    %v89 = vld [vmem:[#allocation2 + $0x4c] sm:$0xf]
    %v90 = vld [vmem:[#allocation2 + $0x50] sm:$0xf]
    %v91 = vld [vmem:[#allocation2 + $0x54] sm:$0xf]
    %v92 = vld [vmem:[#allocation2 + $0x58] sm:$0xf]
    %v93 = vld [vmem:[#allocation2 + $0x5c] sm:$0xf]
    %v94 = vld [vmem:[#allocation2 + $0x60] sm:$0xf]
    %v95 = vld [vmem:[#allocation2 + $0x64] sm:$0xf]
    %v96 = vld [vmem:[#allocation2 + $0x68] sm:$0xf]
    %v97 = vld [vmem:[#allocation2 + $0x6c] sm:$0xf]
    %v98 = vld [vmem:[#allocation2 + $0x70] sm:$0xf]
    %v99 = vld [vmem:[#allocation2 + $0x74] sm:$0xf]
    %v100 = vld [vmem:[#allocation2 + $0x78] sm:$0xf]
    %v101 = vld [vmem:[#allocation2 + $0x7c] sm:$0xf]
    %v102 = vld [vmem:[%s2] sm:$0x1]
    %v103 = vpack.c.bf16 %v68, %v68
    %v104 = vpack.c.bf16 %v69, %v69
    %v106 = vlaneseq
    %v107 = vshrl.u32 %v106, 7
    %v108 = vsub.s32 0, %v107
    %v109 = vrot.slane %v102, %v108
    %v143 = vunpack.c.l.b16 %v70
    %v144 = vunpack.c.l.b16 %v71
    %v145 = vunpack.c.l.b16 %v72
    %v146 = vunpack.c.l.b16 %v73
    %v147 = vunpack.c.l.b16 %v74
    %v148 = vunpack.c.l.b16 %v75
    %v149 = vunpack.c.l.b16 %v76
    %v150 = vunpack.c.l.b16 %v77
    %v151 = vunpack.c.l.b16 %v78
    %v152 = vunpack.c.l.b16 %v79
    %v153 = vunpack.c.l.b16 %v80
    %v154 = vunpack.c.l.b16 %v81
    %v155 = vunpack.c.l.b16 %v82
    %v156 = vunpack.c.l.b16 %v83
    %v157 = vunpack.c.l.b16 %v84
    %v158 = vunpack.c.l.b16 %v85
    %v159 = vunpack.c.l.b16 %v86
    %v160 = vunpack.c.l.b16 %v87
    %v161 = vunpack.c.l.b16 %v88
    %v162 = vunpack.c.l.b16 %v89
    %v163 = vunpack.c.l.b16 %v90
    %v164 = vunpack.c.l.b16 %v91
    %v165 = vunpack.c.l.b16 %v92
    %v166 = vunpack.c.l.b16 %v93
    %v167 = vunpack.c.l.b16 %v94
    %v168 = vunpack.c.l.b16 %v95
    %v169 = vunpack.c.l.b16 %v96
    %v170 = vunpack.c.l.b16 %v97
    %v171 = vunpack.c.l.b16 %v98
    %v172 = vunpack.c.l.b16 %v99
    %v173 = vunpack.c.l.b16 %v100
    %v174 = vunpack.c.l.b16 %v101
    %v175 = vpack.c.b16 %v144, %v143
    %v176 = vpack.c.b16 %v146, %v145
    %v177 = vpack.c.b16 %v148, %v147
    %v178 = vpack.c.b16 %v150, %v149
    %v179 = vpack.c.b16 %v152, %v151
    %v180 = vpack.c.b16 %v154, %v153
    %v181 = vpack.c.b16 %v156, %v155
    %v182 = vpack.c.b16 %v158, %v157
    %v183 = vpack.c.b16 %v160, %v159
    %v184 = vpack.c.b16 %v162, %v161
    %v185 = vpack.c.b16 %v164, %v163
    %v186 = vpack.c.b16 %v166, %v165
    %v187 = vpack.c.b16 %v168, %v167
    %v188 = vpack.c.b16 %v170, %v169
    %v189 = vpack.c.b16 %v172, %v171
    %v190 = vpack.c.b16 %v174, %v173
    %207 = vmatprep.subr.bf16.mxu0 0
    %208 = vmatpush1.bf16.msra.mxu0 %v182
    %209 = vmatprep.subr.bf16.mxu0 0
    %210 = vmatpush1.bf16.msra.mxu0 %v181
    %211 = vmatprep.subr.bf16.mxu0 0
    %212 = vmatpush1.bf16.msra.mxu0 %v180
    %213 = vmatprep.subr.bf16.mxu0 0
    %214 = vmatpush1.bf16.msra.mxu0 %v179
    %215 = vmatprep.subr.bf16.mxu0 0
    %216 = vmatpush1.bf16.msra.mxu0 %v178
    %217 = vmatprep.subr.bf16.mxu0 0
    %218 = vmatpush1.bf16.msra.mxu0 %v177
    %219 = vmatprep.subr.bf16.mxu0 0
    %220 = vmatpush1.bf16.msra.mxu0 %v176
    %221 = vmatprep.subr.bf16.mxu0 0
    %222 = vmatpush1.bf16.msra.mxu0 %v175
    %223 = vmatprep.subr.bf16.mxu0 0
    %224 = vmatpush2.bf16.msra.mxu0 %v190
    %225 = vmatprep.subr.bf16.mxu0 0
    %226 = vmatpush2.bf16.msra.mxu0 %v189
    %227 = vmatprep.subr.bf16.mxu0 0
    %228 = vmatpush2.bf16.msra.mxu0 %v188
    %229 = vmatprep.subr.bf16.mxu0 0
    %230 = vmatpush2.bf16.msra.mxu0 %v187
    %231 = vmatprep.subr.bf16.mxu0 0
    %232 = vmatpush2.bf16.msra.mxu0 %v186
    %233 = vmatprep.subr.bf16.mxu0 0
    %234 = vmatpush2.bf16.msra.mxu0 %v185
    %235 = vmatprep.subr.bf16.mxu0 0
    %236 = vmatpush2.bf16.msra.mxu0 %v184
    %237 = vmatprep.subr.bf16.mxu0 0
    %238 = vmatpush2.bf16.msra.mxu0 %v183
    %239 = vmatprep.mubr.bf16.mxu0 %v104
    %240 = vmatmul.mubr.bf16.gmra.mxu0 %v103
    %v241 = vpop.f32.mrf.mxu0
    %v242 = vadd.f32 %v109, %v241
    %v243 = vpop.f32.mrf.mxu0
    %v244 = vpop.f32.mrf.mxu0
    %v245 = vpop.f32.mrf.mxu0
    %246 = vdwg.mxu0
    %v247 = vmax.f32 %v242, 0.0
    %v248 = vld [vmem:[#allocation4] sm:$0xf]
    %v249 = vld [vmem:[#allocation4 + $0x4] sm:$0xf]
    %v250 = vld [vmem:[#allocation4 + $0x8] sm:$0xf]
    %v251 = vld [vmem:[#allocation4 + $0xc] sm:$0xf]
    %v252 = vld [vmem:[#allocation4 + $0x10] sm:$0xf]
    %v253 = vld [vmem:[#allocation4 + $0x14] sm:$0xf]
    %v254 = vld [vmem:[#allocation4 + $0x18] sm:$0xf]
    %v255 = vld [vmem:[#allocation4 + $0x1c] sm:$0xf]
    %v256 = vld [vmem:[#allocation4 + $0x20] sm:$0xf]
    %v257 = vld [vmem:[#allocation4 + $0x24] sm:$0xf]
    %v258 = vld [vmem:[#allocation4 + $0x28] sm:$0xf]
    %v259 = vld [vmem:[#allocation4 + $0x2c] sm:$0xf]
    %v260 = vld [vmem:[#allocation4 + $0x30] sm:$0xf]
    %v261 = vld [vmem:[#allocation4 + $0x34] sm:$0xf]
    %v262 = vld [vmem:[#allocation4 + $0x38] sm:$0xf]
    %v263 = vld [vmem:[#allocation4 + $0x3c] sm:$0xf]
    %v264 = vld [vmem:[%s4] sm:$0x1]
    %v265 = vpack.c.bf16 %v247, %v247
    %v267 = vlaneseq
    %v268 = vshrl.u32 %v267, 7
    %v269 = vsub.s32 0, %v268
    %v270 = vrot.slane %v264, %v269
    %v288 = vunpack.c.l.b16 %v248
    %v289 = vunpack.c.l.b16 %v249
    %v290 = vunpack.c.l.b16 %v250
    %v291 = vunpack.c.l.b16 %v251
    %v292 = vunpack.c.l.b16 %v252
    %v293 = vunpack.c.l.b16 %v253
    %v294 = vunpack.c.l.b16 %v254
    %v295 = vunpack.c.l.b16 %v255
    %v296 = vunpack.c.l.b16 %v256
    %v297 = vunpack.c.l.b16 %v257
    %v298 = vunpack.c.l.b16 %v258
    %v299 = vunpack.c.l.b16 %v259
    %v300 = vunpack.c.l.b16 %v260
    %v301 = vunpack.c.l.b16 %v261
    %v302 = vunpack.c.l.b16 %v262
    %v303 = vunpack.c.l.b16 %v263
    %v304 = vpack.c.b16 %v289, %v288
    %v305 = vpack.c.b16 %v291, %v290
    %v306 = vpack.c.b16 %v293, %v292
    %v307 = vpack.c.b16 %v295, %v294
    %v308 = vpack.c.b16 %v297, %v296
    %v309 = vpack.c.b16 %v299, %v298
    %v310 = vpack.c.b16 %v301, %v300
    %v311 = vpack.c.b16 %v303, %v302
    %320 = vmatprep.subr.bf16.mxu0 0
    %321 = vmatpush1.bf16.msra.mxu0 %v311
    %322 = vmatprep.subr.bf16.mxu0 0
    %323 = vmatpush1.bf16.msra.mxu0 %v310
    %324 = vmatprep.subr.bf16.mxu0 0
    %325 = vmatpush1.bf16.msra.mxu0 %v309
    %326 = vmatprep.subr.bf16.mxu0 0
    %327 = vmatpush1.bf16.msra.mxu0 %v308
    %328 = vmatprep.subr.bf16.mxu0 0
    %329 = vmatpush1.bf16.msra.mxu0 %v307
    %330 = vmatprep.subr.bf16.mxu0 0
    %331 = vmatpush1.bf16.msra.mxu0 %v306
    %332 = vmatprep.subr.bf16.mxu0 0
    %333 = vmatpush1.bf16.msra.mxu0 %v305
    %334 = vmatprep.subr.bf16.mxu0 0
    %335 = vmatpush1.bf16.msra.mxu0 %v304
    %336 = vmatprep.subr.bf16.mxu0 0
    %337 = vmatpush2.bf16.msra.mxu0 0
    %338 = vmatprep.subr.bf16.mxu0 0
    %339 = vmatpush2.bf16.msra.mxu0 0
    %340 = vmatprep.subr.bf16.mxu0 0
    %341 = vmatpush2.bf16.msra.mxu0 0
    %342 = vmatprep.subr.bf16.mxu0 0
    %343 = vmatpush2.bf16.msra.mxu0 0
    %344 = vmatprep.subr.bf16.mxu0 0
    %345 = vmatpush2.bf16.msra.mxu0 0
    %346 = vmatprep.subr.bf16.mxu0 0
    %347 = vmatpush2.bf16.msra.mxu0 0
    %348 = vmatprep.subr.bf16.mxu0 0
    %349 = vmatpush2.bf16.msra.mxu0 0
    %350 = vmatprep.subr.bf16.mxu0 0
    %351 = vmatpush2.bf16.msra.mxu0 0
    %352 = vmatprep.mubr.bf16.mxu0 0
    %353 = vmatmul.mubr.bf16.gmra.mxu0 %v265
    %v354 = vpop.f32.mrf.mxu0
    %v355 = vadd.f32 %v270, %v354
    %v356 = vpop.f32.mrf.mxu0
    %v357 = vpop.f32.mrf.mxu0
    %v358 = vpop.f32.mrf.mxu0
    %359 = vdwg.mxu0
    %v360 = vmax.f32 %v355, 0.0
    %v361 = vld [vmem:[#allocation6] sm:$0xf]
    %v362 = vld [vmem:[#allocation6 + $0x4] sm:$0xf]
    %v363 = vld [vmem:[#allocation6 + $0x8] sm:$0xf]
    %v364 = vld [vmem:[#allocation6 + $0xc] sm:$0xf]
    %v365 = vld [vmem:[#allocation6 + $0x10] sm:$0xf]
    %v366 = vld [vmem:[#allocation6 + $0x14] sm:$0xf]
    %v367 = vld [vmem:[#allocation6 + $0x18] sm:$0xf]
    %v368 = vld [vmem:[#allocation6 + $0x1c] sm:$0xf]
    %v369 = vld [vmem:[#allocation6 + $0x20] sm:$0xf]
    %v370 = vld [vmem:[#allocation6 + $0x24] sm:$0xf]
    %v371 = vld [vmem:[#allocation6 + $0x28] sm:$0xf]
    %v372 = vld [vmem:[#allocation6 + $0x2c] sm:$0xf]
    %v373 = vld [vmem:[#allocation6 + $0x30] sm:$0xf]
    %v374 = vld [vmem:[#allocation6 + $0x34] sm:$0xf]
    %v375 = vld [vmem:[#allocation6 + $0x38] sm:$0xf]
    %v376 = vld [vmem:[#allocation6 + $0x3c] sm:$0xf]
    %v377 = vld [vmem:[%s6] sm:$0x1]
    %v378 = vpack.c.bf16 %v360, %v360
    %v380 = vlaneseq
    %v381 = vshrl.u32 %v380, 7
    %v382 = vsub.s32 0, %v381
    %v383 = vrot.slane %v377, %v382
    %v401 = vunpack.c.l.b16 %v361
    %v402 = vunpack.c.l.b16 %v362
    %v403 = vunpack.c.l.b16 %v363
    %v404 = vunpack.c.l.b16 %v364
    %v405 = vunpack.c.l.b16 %v365
    %v406 = vunpack.c.l.b16 %v366
    %v407 = vunpack.c.l.b16 %v367
    %v408 = vunpack.c.l.b16 %v368
    %v409 = vunpack.c.l.b16 %v369
    %v410 = vunpack.c.l.b16 %v370
    %v411 = vunpack.c.l.b16 %v371
    %v412 = vunpack.c.l.b16 %v372
    %v413 = vunpack.c.l.b16 %v373
    %v414 = vunpack.c.l.b16 %v374
    %v415 = vunpack.c.l.b16 %v375
    %v416 = vunpack.c.l.b16 %v376
    %v417 = vpack.c.b16 %v402, %v401
    %v418 = vpack.c.b16 %v404, %v403
    %v419 = vpack.c.b16 %v406, %v405
    %v420 = vpack.c.b16 %v408, %v407
    %v421 = vpack.c.b16 %v410, %v409
    %v422 = vpack.c.b16 %v412, %v411
    %v423 = vpack.c.b16 %v414, %v413
    %v424 = vpack.c.b16 %v416, %v415
    %433 = vmatprep.subr.bf16.mxu0 0
    %434 = vmatpush1.bf16.msra.mxu0 %v424
    %435 = vmatprep.subr.bf16.mxu0 0
    %436 = vmatpush1.bf16.msra.mxu0 %v423
    %437 = vmatprep.subr.bf16.mxu0 0
    %438 = vmatpush1.bf16.msra.mxu0 %v422
    %439 = vmatprep.subr.bf16.mxu0 0
    %440 = vmatpush1.bf16.msra.mxu0 %v421
    %441 = vmatprep.subr.bf16.mxu0 0
    %442 = vmatpush1.bf16.msra.mxu0 %v420
    %443 = vmatprep.subr.bf16.mxu0 0
    %444 = vmatpush1.bf16.msra.mxu0 %v419
    %445 = vmatprep.subr.bf16.mxu0 0
    %446 = vmatpush1.bf16.msra.mxu0 %v418
    %447 = vmatprep.subr.bf16.mxu0 0
    %448 = vmatpush1.bf16.msra.mxu0 %v417
    %449 = vmatprep.subr.bf16.mxu0 0
    %450 = vmatpush2.bf16.msra.mxu0 0
    %451 = vmatprep.subr.bf16.mxu0 0
    %452 = vmatpush2.bf16.msra.mxu0 0
    %453 = vmatprep.subr.bf16.mxu0 0
    %454 = vmatpush2.bf16.msra.mxu0 0
    %455 = vmatprep.subr.bf16.mxu0 0
    %456 = vmatpush2.bf16.msra.mxu0 0
    %457 = vmatprep.subr.bf16.mxu0 0
    %458 = vmatpush2.bf16.msra.mxu0 0
    %459 = vmatprep.subr.bf16.mxu0 0
    %460 = vmatpush2.bf16.msra.mxu0 0
    %461 = vmatprep.subr.bf16.mxu0 0
    %462 = vmatpush2.bf16.msra.mxu0 0
    %463 = vmatprep.subr.bf16.mxu0 0
    %464 = vmatpush2.bf16.msra.mxu0 0
    %465 = vmatprep.mubr.bf16.mxu0 0
    %466 = vmatmul.mubr.bf16.gmra.mxu0 %v378
    %v467 = vpop.f32.mrf.mxu0
    %v468 = vadd.f32 %v383, %v467
    %v469 = vpop.f32.mrf.mxu0
    %v470 = vpop.f32.mrf.mxu0
    %v471 = vpop.f32.mrf.mxu0
    %472 = vdwg.mxu0
    %473 = vst [vmem:[%s7] sm:$0xff] %v468
    // Predicated region
    $region42: #{linear_base_model_forward.1} parent=1 // pred_check
      _
    $region43: #{linear_base_model_forward.1} parent=1 // pred_check_branch
      %475 = sbr.rel (0) target = $region45
    $region44: #{linear_base_model_forward.1} parent=1 // pred_region
      _
    $region45: #{linear_base_model_forward.1} parent=1 // pred_fallthru
      _
    // Predicated region
    $region46: #{linear_base_model_forward.1} parent=1 // pred_check
      _
    $region47: #{linear_base_model_forward.1} parent=1 // pred_check_branch
      %477 = sbr.rel (0) target = $region49
    $region48: #{linear_base_model_forward.1} parent=1 // pred_region
      _
    $region49: #{linear_base_model_forward.1} parent=1 // pred_fallthru
      _
    %478 = vsyncpa [#allocation3], 1
    %479 = vsyncpa [#allocation5], 1

</llo_original>
